<compile_context>
chip_gen: v5e
topology: v5e:2x2
jax: 0.10.0
libtpu: 0.0.40
codegen_flags: <defaults>
</compile_context>

<pallas_src>
import jax
import jax.numpy as jnp
from jax.experimental import pallas as pl
from jax.experimental.pallas import tpu as pltpu


# ----------------------------------------------------------------------------
# ImageNormalizer kernel
# ----------------------------------------------------------------------------
def _normalize_kernel(x_ref, scale_ref, bias_ref, o_ref):
    # x_ref:     (rows_blk, hw_blk)  -- one row = one channel of one image
    # scale_ref: (rows_blk, 1)       -- per-row 1/std
    # bias_ref:  (rows_blk, 1)       -- per-row -mean/std
    x = x_ref[...].astype(jnp.float32)
    o_ref[...] = (x * scale_ref[...] + bias_ref[...]).astype(o_ref.dtype)


def _pick_tile(dim, unit, cap):
    """Largest multiple of `unit` that divides `dim` (<= cap); else the full dim.

    Full-dim fallback keeps the (8, 128) BlockSpec rule satisfied for shapes
    that are not unit-aligned (e.g. B*C = 6, or H*W not a multiple of 128).
    """
    if dim % unit != 0:
        return dim
    best = unit
    t = unit
    limit = min(dim, cap)
    while t <= limit:
        if dim % t == 0:
            best = t
        t += unit
    return best


def image_normalize(x, mean, std, out_dtype=None):
    """(x - mean) / std with mean/std of shape (1, C, 1, 1), x of shape (B, C, H, W)."""
    B, C, H, W = x.shape
    assert mean.shape == (1, C, 1, 1) and std.shape == (1, C, 1, 1)
    out_dtype = x.dtype if out_dtype is None else out_dtype

    R, HW = B * C, H * W
    x2 = x.reshape(R, HW)  # lane-dense view; free reshape (contiguous NCHW)

    # Precompute scale = 1/std and bias = -mean/std, replicated per image row
    # (row r corresponds to channel r % C).  Tiny (B*C, 1) f32 arrays.
    inv_std = (1.0 / std.astype(jnp.float32)).reshape(1, C)
    neg_mean_over_std = (-mean.astype(jnp.float32) / std.astype(jnp.float32)).reshape(1, C)
    scale = jnp.tile(inv_std, (B, 1)).reshape(R, 1)
    bias = jnp.tile(neg_mean_over_std, (B, 1)).reshape(R, 1)

    itemsize = jnp.dtype(x.dtype).itemsize
    # Lane tile: multiple of 128, up to 2048 lanes (measured sweet spot).
    hw_blk = _pick_tile(HW, 128, 2048)
    # Row tile: multiple of 8 sublanes; cap block at ~2 MiB so double-buffered
    # in+out stays well under every generation's scoped-VMEM default
    # (v5e 16 MiB, v6e 32 MiB, v7x 32 MiB).
    row_cap = max(8, (2 * 1024 * 1024) // (hw_blk * itemsize))
    rows_blk = _pick_tile(R, 8, row_cap)

    grid = (R // rows_blk, HW // hw_blk)

    out2 = pl.pallas_call(
        _normalize_kernel,
        out_shape=jax.ShapeDtypeStruct((R, HW), out_dtype),
        grid_spec=pltpu.PrefetchScalarGridSpec(
            num_scalar_prefetch=0,
            grid=grid,
            in_specs=[
                pl.BlockSpec((rows_blk, hw_blk), lambda i, j: (i, j)),
                pl.BlockSpec((rows_blk, 1), lambda i, j: (i, 0)),
                pl.BlockSpec((rows_blk, 1), lambda i, j: (i, 0)),
            ],
            out_specs=pl.BlockSpec((rows_blk, hw_blk), lambda i, j: (i, j)),
        ),
        compiler_params=pltpu.CompilerParams(
            dimension_semantics=("parallel", "parallel"),
        ),
    )(x2, scale, bias)

    return out2.reshape(B, C, H, W)


# ----------------------------------------------------------------------------
# CustomCLIP head kernel: feature L2-normalization + scaled cosine-sim logits
# ----------------------------------------------------------------------------
def _clip_logits_kernel(scale_ref, img_ref, txt_ref, o_ref):
    img = img_ref[...].astype(jnp.float32)
    txt = txt_ref[...].astype(jnp.float32)
    img = img * jax.lax.rsqrt(jnp.sum(img * img, axis=-1, keepdims=True))
    txt = txt * jax.lax.rsqrt(jnp.sum(txt * txt, axis=-1, keepdims=True))
    # Contract feature dims directly (no materialized transpose).
    logits = jax.lax.dot_general(
        img, txt, (((1,), (1,)), ((), ())), preferred_element_type=jnp.float32
    )
    o_ref[...] = (scale_ref[0] * logits).astype(o_ref.dtype)


def clip_logits(image_features, text_features, logit_scale):
    """exp(logit_scale) * normalize(img) @ normalize(txt).T"""
    B, D = image_features.shape
    N, D2 = text_features.shape
    assert D == D2
    scale = jnp.exp(jnp.asarray(logit_scale, dtype=jnp.float32)).reshape(1)

    return pl.pallas_call(
        _clip_logits_kernel,
        out_shape=jax.ShapeDtypeStruct((B, N), jnp.float32),
        in_specs=[
            pl.BlockSpec(memory_space=pltpu.MemorySpace.SMEM),
            pl.BlockSpec(memory_space=pltpu.MemorySpace.VMEM),
            pl.BlockSpec(memory_space=pltpu.MemorySpace.VMEM),
        ],
        out_specs=pl.BlockSpec(memory_space=pltpu.MemorySpace.VMEM),
    )(scale, image_features, text_features)


if __name__ == "__main__":
    key = jax.random.PRNGKey(0)
    k1, k2, k3 = jax.random.split(key, 3)

    # ---- ImageNormalizer (CLIP normalization constants; module hardcodes C=3)
    mean_vals = jnp.array([0.48145466, 0.4578275, 0.40821073], dtype=jnp.float32)
    std_vals = jnp.array([0.26862954, 0.26130258, 0.27577711], dtype=jnp.float32)
    mean = mean_vals.reshape(1, 3, 1, 1)
    std = std_vals.reshape(1, 3, 1, 1)

    x = jax.random.uniform(k1, (2, 3, 16, 16), dtype=jnp.float32)
    x_norm = jax.block_until_ready(image_normalize(x, mean, std))
    ref_norm = (x - mean) / std
    assert x_norm.shape == x.shape and x_norm.dtype == x.dtype
    assert jnp.allclose(x_norm, ref_norm, atol=1e-5, rtol=1e-5)

    # ---- CLIP head: stand-in encoder outputs -> normalize + scaled logits
    # TODO(synk): real image/text features come from pretrained CLIP towers.
    B, D, N_CLS = 2, 32, 8
    img_feat = jax.random.normal(k2, (B, D), dtype=jnp.float32)
    txt_feat = jax.random.normal(k3, (N_CLS, D), dtype=jnp.float32)
    logit_scale = jnp.float32(jnp.log(1.0 / 0.07))  # CLIP init

    logits = jax.block_until_ready(clip_logits(img_feat, txt_feat, logit_scale))
    inorm = img_feat / jnp.linalg.norm(img_feat, axis=-1, keepdims=True)
    tnorm = txt_feat / jnp.linalg.norm(txt_feat, axis=-1, keepdims=True)
    ref_logits = jnp.exp(logit_scale) * inorm @ tnorm.T
    assert logits.shape == (B, N_CLS)
    assert jnp.allclose(logits, ref_logits, atol=1e-3, rtol=1e-5)

    print("KERNEL_OK")
</pallas_src>

<mosaic_0001>
module attributes {stable_mosaic.version = 11 : i64} {
  func.func @_normalize_kernel(%arg0: i32, %arg1: i32, %arg2: memref<6x256xf32, #tpu.memory_space<vmem>>, %arg3: memref<6x1xf32, #tpu.memory_space<vmem>>, %arg4: memref<6x1xf32, #tpu.memory_space<vmem>>, %arg5: memref<6x256xf32, #tpu.memory_space<vmem>>) attributes {dimension_semantics = [#tpu.dimension_semantics<parallel>, #tpu.dimension_semantics<parallel>], iteration_bounds = array<i64: 1, 1>, scalar_prefetch = 0 : i64, scratch_operands = 0 : i64, tpu.core_type = #tpu.core_type<tc>, window_params = [{transform_indices = @transform_0, window_bounds = array<i64: 6, 256>}, {transform_indices = @transform_1, window_bounds = array<i64: 6, 1>}, {transform_indices = @transform_2, window_bounds = array<i64: 6, 1>}, {transform_indices = @transform_3, window_bounds = array<i64: 6, 256>}]} {
    %c0 = arith.constant 0 : index
    %c0_0 = arith.constant 0 : index
    %0 = vector.load %arg2[%c0, %c0_0] : memref<6x256xf32, #tpu.memory_space<vmem>>, vector<6x256xf32>
    %c0_1 = arith.constant 0 : index
    %c0_2 = arith.constant 0 : index
    %1 = vector.load %arg3[%c0_1, %c0_2] : memref<6x1xf32, #tpu.memory_space<vmem>>, vector<6x1xf32>
    %2 = vector.broadcast %1 : vector<6x1xf32> to vector<6x256xf32>
    %3 = arith.mulf %0, %2 : vector<6x256xf32>
    %c0_3 = arith.constant 0 : index
    %c0_4 = arith.constant 0 : index
    %4 = vector.load %arg4[%c0_3, %c0_4] : memref<6x1xf32, #tpu.memory_space<vmem>>, vector<6x1xf32>
    %5 = vector.broadcast %4 : vector<6x1xf32> to vector<6x256xf32>
    %6 = arith.addf %3, %5 : vector<6x256xf32>
    %c0_5 = arith.constant 0 : index
    %c0_6 = arith.constant 0 : index
    %7 = vector.load %arg5[%c0_5, %c0_6] : memref<6x256xf32, #tpu.memory_space<vmem>>, vector<6x256xf32>
    tpu.vector_store %arg5[%c0_5, %c0_6], %6 {strides = array<i32>} : memref<6x256xf32, #tpu.memory_space<vmem>>, vector<6x256xf32>,
    return
  }
  func.func @transform_0(%arg0: i32, %arg1: i32) -> (i32, i32) {
    %c0_i32 = arith.constant 0 : i32
    return %arg0, %arg1 : i32, i32
  }
  func.func @transform_1(%arg0: i32, %arg1: i32) -> (i32, i32) {
    %c0_i32 = arith.constant 0 : i32
    %c0_i32_0 = arith.constant 0 : i32
    return %arg0, %c0_i32 : i32, i32
  }
  func.func @transform_2(%arg0: i32, %arg1: i32) -> (i32, i32) {
    %c0_i32 = arith.constant 0 : i32
    %c0_i32_0 = arith.constant 0 : i32
    return %arg0, %c0_i32 : i32, i32
  }
  func.func @transform_3(%arg0: i32, %arg1: i32) -> (i32, i32) {
    %c0_i32 = arith.constant 0 : i32
    return %arg0, %arg1 : i32, i32
  }
}

</mosaic_0001>

<llo_original>
// kernel: tpu_custom_call.1
$region0: #{tpu_custom_call.1}
  #allocation0 [shape = 'u32[]', space=smem, size = 0x4, offset = 0x4, fixed_abs, tag = 'smem constant byte address 0x4 - core index']
  #allocation1 [shape = 'u32[72,128]{1,0:T(1,128)}', space=vmem, size = 0x9000, scoped, tag = 'internal scratch']
  %s0 = inlined_call_operand.vmem [shape: f32[6,256], index: 0, kind: input, shape index: {}]
  %s1 = inlined_call_operand.vmem [shape: f32[6,1], index: 1, kind: input, shape index: {}]
  %s2 = inlined_call_operand.vmem [shape: f32[6,1], index: 2, kind: input, shape index: {}]
  %s3 = inlined_call_operand.hbm [shape: f32[6,256], index: 3, kind: output, shape index: {}]
  %s4 = sld [smem:[#allocation0]]
  $region22: #{tpu_custom_call.1} parent=0
    _
  %s6 = ssub.s32 1, %s4
  %s7 = scalar_select 0, %s6, %s4
  $region1: #{tpu_custom_call.1} parent=0
    #allocation2 [shape = 'u8[8192]{0}', space=vmem, size = 0x2000, scoped, tag = 'output window, operand 0, single buffered']
    #allocation3 [shape = 's32[1]{0}', space=sflag, size = 0x4, scoped, tag = 'scoped memory for tpu_custom_call.1']
    %8 = vsyncpa [#allocation3], 0
    // Predicated region
    $region2: #{tpu_custom_call.1} parent=1 // pred_check
      _
    $region3: #{tpu_custom_call.1} parent=1 // pred_check_branch
      %10 = sbr.rel (0) target = $region5
    $region4: #{tpu_custom_call.1} parent=1 // pred_region
      _
    $region5: #{tpu_custom_call.1} parent=1 // pred_fallthru
      _
    // Predicated region
    $region6: #{tpu_custom_call.1} parent=1 // pred_check
      _
    $region7: #{tpu_custom_call.1} parent=1 // pred_check_branch
      %12 = sbr.rel (0) target = $region9
    $region8: #{tpu_custom_call.1} parent=1 // pred_region
      _
    $region9: #{tpu_custom_call.1} parent=1 // pred_fallthru
      _
    // Predicated region
    $region10: #{tpu_custom_call.1} parent=1 // pred_check
      _
    $region11: #{tpu_custom_call.1} parent=1 // pred_check_branch
      %14 = sbr.rel (0) target = $region13
    $region12: #{tpu_custom_call.1} parent=1 // pred_region
      _
    $region13: #{tpu_custom_call.1} parent=1 // pred_fallthru
      _
    %v15 = vld [vmem:[%s0] sm:$0x3f]
    %v16 = vld [vmem:[%s0 + $0x8] sm:$0x3f]
    %v17 = vld [vmem:[%s1] sm:$0x3f]
    %19 = vset.pattern.permute.xlu0 0
    %20 = vperm.xlu0 %19, %v17
    %v21 = vpop.permute.xlu0 %20
    %v23 = vmul.f32 %v15, %v21
    %v24 = vmul.f32 %v16, %v21
    %v25 = vld [vmem:[%s2] sm:$0x3f]
    %27 = vset.pattern.permute.xlu0 0
    %28 = vperm.xlu0 %27, %v25
    %v29 = vpop.permute.xlu0 %28
    %v31 = vadd.f32 %v23, %v29
    %v32 = vadd.f32 %v24, %v29
    %33 = vst [vmem:[#allocation2] sm:$0x3f] %v31
    %34 = vst [vmem:[#allocation2 + $0x8] sm:$0x3f] %v32
    // Predicated region
    $region14: #{tpu_custom_call.1} parent=1 // pred_check
      _
    $region15: #{tpu_custom_call.1} parent=1 // pred_check_branch
      %36 = sbr.rel (0) target = $region17
    $region16: #{tpu_custom_call.1} parent=1 // pred_region
      %38 = vsyncadd [#allocation3], 0
      %s40 = sshll.u32 [#allocation2], 4
      %s41 = int_to_ptr.vmem [resolvable:$true] %s40
      %s42 = sshll.u32 %s3, 4
      %s43 = int_to_ptr.hbm [resolvable:$true] %s42
      %45 = dma.vmem_to_hbm [thread:$0]  %s41, 256, %s43, [#allocation3]
    $region17: #{tpu_custom_call.1} parent=1 // pred_fallthru
      _
    // Predicated region
    $region18: #{tpu_custom_call.1} parent=1 // pred_check
      _
    $region19: #{tpu_custom_call.1} parent=1 // pred_check_branch
      %47 = sbr.rel (0) target = $region21
    $region20: #{tpu_custom_call.1} parent=1 // pred_region
      %49 = dma.done [#allocation3], 256
    $region21: #{tpu_custom_call.1} parent=1 // pred_fallthru
      _
    %50 = vsyncpa [#allocation3], 1

</llo_original>
